<compile_context>
chip_gen: v6e
topology: v6e:2x2x1
jax: 0.10.0
libtpu: 0.0.40
codegen_flags: <defaults>
</compile_context>

<pallas_src>
import functools

import jax
import jax.numpy as jnp
from jax.experimental import pallas as pl
from jax.experimental.pallas import tpu as pltpu


_LANE = 128
_SUBLANE = 8
_ONE_HOT_MAX_VOCAB = 512                      # one-hot gather only below this
_VMEM_RESIDENCY_BUDGET = 48 * 1024 * 1024     # ~75% of v7x's 64 MiB / TensorCore


def _round_up(n, m):
    return ((n + m - 1) // m) * m


def _lora_embedding_kernel(ids_ref, w_ref, a_ref, b_ref, o_ref, *,
                           scaling, use_onehot, num_rows):
    # ids_ref : (TM, 1) int32 — token ids for this tile
    # w_ref   : (V, D)  f32   — base embedding table   (grid-invariant block)
    # a_ref   : (V, r)  f32   — lora_A.T               (grid-invariant block)
    # b_ref   : (r, D)  f32   — lora_B.T               (grid-invariant block)
    # o_ref   : (TM, D) out_dtype
    ids = ids_ref[...]                                        # (TM, 1)
    tm = ids.shape[0]

    if use_onehot:
        # Tiny vocab: gather both tables via one-hot contractions on the MXU.
        col = jax.lax.broadcasted_iota(jnp.int32, (tm, num_rows), 1)
        onehot = (col == ids).astype(jnp.float32)             # exact 0/1, f32
        base = jnp.dot(onehot, w_ref[...],
                       preferred_element_type=jnp.float32)    # (TM, D)
        arows = jnp.dot(onehot, a_ref[...],
                        preferred_element_type=jnp.float32)   # (TM, r)
    else:
        # Direct in-VMEM row gather: O(TM*D), no (TM, V) temporary, and the
        # base rows are exact f32 copies of the table rows.
        idx = jnp.clip(ids[:, 0], 0, num_rows - 1)            # (TM,)
        base = jnp.take(w_ref[...], idx, axis=0)              # (TM, D)
        arows = jnp.take(a_ref[...], idx, axis=0)             # (TM, r)

    # Rank-r LoRA correction as one small (TM, r) @ (r, D) matmul.
    delta = jnp.dot(arows, b_ref[...], preferred_element_type=jnp.float32)
    o_ref[...] = (base + scaling * delta).astype(o_ref.dtype)


def _vmem_bytes_estimate(V, D, r, tm, out_itemsize, use_onehot):
    """Conservative VMEM footprint: 2x pipeline buffers, (8,128) layout padding."""
    f32 = 4
    Vp, Dp = _round_up(V, _SUBLANE), _round_up(D, _LANE)
    r_lane, r_sub = _round_up(r, _LANE), _round_up(r, _SUBLANE)
    table = 2 * Vp * Dp * f32                       # base table
    lora_a = 2 * Vp * r_lane * f32                  # lora_A.T (r lane-padded)
    lora_b = 2 * r_sub * Dp * f32
    ids = 2 * _round_up(tm, _SUBLANE) * _LANE * 4   # (TM, 1) int32, lane-padded
    out = 2 * tm * Dp * out_itemsize
    tmp = tm * Dp * f32 + tm * r_lane * f32         # gathered rows / matmul temps
    if use_onehot:
        tmp += tm * _round_up(V, _LANE) * f32       # (TM, V) one-hot temporary
    return table + lora_a + lora_b + ids + out + tmp


def lora_embedding(x, weight, lora_A, lora_B, scaling, *, tm=512,
                   out_dtype=None, gather_mode=None):
    """x: [B, S] int; weight: [V, D]; lora_A: [r, V]; lora_B: [D, r] -> [B, S, D]."""
    B, S = x.shape
    V, D = weight.shape
    r = lora_A.shape[0]
    out_dtype = weight.dtype if out_dtype is None else out_dtype
    N = B * S

    # Table prep: transposes of the small LoRA factors only — no LoRA fold and
    # no O(V*D) rewrite per call (astype is a no-op for f32 weights).
    w_t = weight.astype(jnp.float32)          # (V, D)
    a_t = lora_A.T.astype(jnp.float32)        # (V, r)
    b_t = lora_B.T.astype(jnp.float32)        # (r, D)

    # Token tile: large (amortize ~0.35us/step, lane-dense output stores), but
    # clamped so the grid has >= 4 steps (>= 2 per TensorCore on v7x).
    tm = max(_SUBLANE, min(_round_up(tm, _SUBLANE),
                           _round_up(-(-N // 4), _SUBLANE)))
    Np = _round_up(N, tm)
    ids = jnp.pad(x.reshape(-1).astype(jnp.int32), (0, Np - N)).reshape(Np, 1)

    if gather_mode is None:
        gather_mode = "onehot" if V <= _ONE_HOT_MAX_VOCAB else "take"
    use_onehot = gather_mode == "onehot"

    vmem_need = _vmem_bytes_estimate(V, D, r, tm, jnp.dtype(out_dtype).itemsize,
                                     use_onehot)
    if vmem_need > _VMEM_RESIDENCY_BUDGET:
        # TODO(synk): DMA-gather path (table in pl.ANY/HBM, ids scalar-prefetched
        # to SMEM, per-row pltpu.make_async_copy) for tables that do not fit VMEM.
        raise NotImplementedError(
            f"VMEM-resident gather needs ~{vmem_need >> 20} MiB > "
            f"{_VMEM_RESIDENCY_BUDGET >> 20} MiB budget; DMA-gather path is TODO.")
    vmem_limit = int(min(max(vmem_need + (4 << 20), 16 << 20), 128 << 20))

    kernel = functools.partial(_lora_embedding_kernel, scaling=float(scaling),
                               use_onehot=use_onehot, num_rows=V)

    out = pl.pallas_call(
        kernel,
        out_shape=jax.ShapeDtypeStruct((Np, D), out_dtype),
        grid_spec=pltpu.PrefetchScalarGridSpec(
            num_scalar_prefetch=0,
            grid=(Np // tm,),
            in_specs=[
                pl.BlockSpec((tm, 1), lambda i: (i, 0)),   # token-id tile
                pl.BlockSpec((V, D), lambda i: (0, 0)),    # base table (invariant)
                pl.BlockSpec((V, r), lambda i: (0, 0)),    # lora_A.T   (invariant)
                pl.BlockSpec((r, D), lambda i: (0, 0)),    # lora_B.T   (invariant)
            ],
            out_specs=pl.BlockSpec((tm, D), lambda i: (i, 0)),
        ),
        compiler_params=pltpu.CompilerParams(
            dimension_semantics=("parallel",),             # megacore / v7x 2-TC
            vmem_limit_bytes=vmem_limit,
        ),
    )(ids, w_t, a_t, b_t)

    return out[:N].reshape(B, S, D)


if __name__ == "__main__":
    # Small shapes consistent with the module: vocab=64, dim=128, r=8, alpha=16.
    # B*S = 512 tokens -> tm clamps to 128 -> grid of 4 (>= 2 steps per v7x core).
    V, D, r, alpha = 64, 128, 8, 16
    B, S = 4, 128
    scaling = alpha / r

    key = jax.random.PRNGKey(0)
    k1, k2, k3, k4 = jax.random.split(key, 4)

    # nn.Embedding weight ~ N(0,1); lora_A ~ N(0, 1/r); lora_B is zero-init in
    # the module — small nonzero values here so the LoRA path is exercised.
    weight = jax.random.normal(k1, (V, D), jnp.float32)
    lora_A = jax.random.normal(k2, (r, V), jnp.float32) * (1.0 / r)
    lora_B = jax.random.normal(k3, (D, r), jnp.float32) * 0.01
    x = jax.random.randint(k4, (B, S), 0, V, jnp.int32)

    # Reference: exact module math in f32 (eval-mode dropout = identity).
    ref = weight[x] + scaling * (lora_A.T[x] @ lora_B.T)

    # Default path: f32 output (module parity), tiny-vocab one-hot gather.
    out = jax.block_until_ready(lora_embedding(x, weight, lora_A, lora_B, scaling))
    assert out.shape == (B, S, D) and out.dtype == weight.dtype
    assert jnp.allclose(out, ref, atol=2.5e-2, rtol=1e-2), "mismatch vs f32 reference"

    # bf16-output knob (halves the store-bound writeback for bf16 models).
    out_bf16 = jax.block_until_ready(
        lora_embedding(x, weight, lora_A, lora_B, scaling, out_dtype=jnp.bfloat16))
    assert out_bf16.dtype == jnp.bfloat16
    assert jnp.allclose(out_bf16.astype(jnp.float32), ref, atol=5e-2, rtol=5e-2), \
        "mismatch vs f32 reference (bf16 output)"

    print("KERNEL_OK")
</pallas_src>

<mosaic_0001>
module attributes {stable_mosaic.version = 11 : i64} {
  func.func @_lora_embedding_kernel(%arg0: i32, %arg1: memref<128x1xi32, #tpu.memory_space<vmem>>, %arg2: memref<64x128xf32, #tpu.memory_space<vmem>>, %arg3: memref<64x8xf32, #tpu.memory_space<vmem>>, %arg4: memref<8x128xf32, #tpu.memory_space<vmem>>, %arg5: memref<128x128xf32, #tpu.memory_space<vmem>>) attributes {dimension_semantics = [#tpu.dimension_semantics<parallel>], iteration_bounds = array<i64: 4>, scalar_prefetch = 0 : i64, scratch_operands = 0 : i64, tpu.core_type = #tpu.core_type<tc>, window_params = [{transform_indices = @transform_0, window_bounds = array<i64: 128, 1>}, {pipeline_mode = #tpu.pipeline_mode<synchronous>, transform_indices = @transform_1, window_bounds = array<i64: 64, 128>}, {pipeline_mode = #tpu.pipeline_mode<synchronous>, transform_indices = @transform_2, window_bounds = array<i64: 64, 8>}, {pipeline_mode = #tpu.pipeline_mode<synchronous>, transform_indices = @transform_3, window_bounds = array<i64: 8, 128>}, {transform_indices = @transform_4, window_bounds = array<i64: 128, 128>}]} {
    %c0 = arith.constant 0 : index
    %c0_0 = arith.constant 0 : index
    %0 = vector.load %arg1[%c0, %c0_0] : memref<128x1xi32, #tpu.memory_space<vmem>>, vector<128x1xi32>
    %1 = tpu.iota {dimensions = array<i32: 1>} : vector<128x64xi32>
    %2 = vector.broadcast %0 : vector<128x1xi32> to vector<128x64xi32>
    %3 = arith.cmpi eq, %1, %2 : vector<128x64xi32>
    %4 = arith.extui %3 : vector<128x64xi1> to vector<128x64xi32>
    %5 = arith.sitofp %4 : vector<128x64xi32> to vector<128x64xf32>
    %c0_1 = arith.constant 0 : index
    %c0_2 = arith.constant 0 : index
    %6 = vector.load %arg2[%c0_1, %c0_2] : memref<64x128xf32, #tpu.memory_space<vmem>>, vector<64x128xf32>
    %cst = arith.constant dense<0.000000e+00> : vector<128x128xf32>
    %7 = tpu.matmul %5, %6, %cst {dimension_numbers = #tpu.dot_dimension_numbers<[1], [0], [0], [1], [0, 0, 1, 1], [], []>} : vector<128x64xf32>, vector<64x128xf32>, vector<128x128xf32> -> vector<128x128xf32>
    %c0_3 = arith.constant 0 : index
    %c0_4 = arith.constant 0 : index
    %8 = vector.load %arg3[%c0_3, %c0_4] : memref<64x8xf32, #tpu.memory_space<vmem>>, vector<64x8xf32>
    %cst_5 = arith.constant dense<0.000000e+00> : vector<128x8xf32>
    %9 = tpu.matmul %5, %8, %cst_5 {dimension_numbers = #tpu.dot_dimension_numbers<[1], [0], [0], [1], [0, 0, 1, 1], [], []>} : vector<128x64xf32>, vector<64x8xf32>, vector<128x8xf32> -> vector<128x8xf32>
    %c0_6 = arith.constant 0 : index
    %c0_7 = arith.constant 0 : index
    %10 = vector.load %arg4[%c0_6, %c0_7] : memref<8x128xf32, #tpu.memory_space<vmem>>, vector<8x128xf32>
    %cst_8 = arith.constant dense<0.000000e+00> : vector<128x128xf32>
    %11 = tpu.matmul %9, %10, %cst_8 {dimension_numbers = #tpu.dot_dimension_numbers<[1], [0], [0], [1], [0, 0, 1, 1], [], []>} : vector<128x8xf32>, vector<8x128xf32>, vector<128x128xf32> -> vector<128x128xf32>
    %cst_9 = arith.constant 2.000000e+00 : f32
    %12 = vector.broadcast %cst_9 : f32 to vector<128x128xf32>
    %13 = arith.mulf %12, %11 : vector<128x128xf32>
    %14 = arith.addf %7, %13 : vector<128x128xf32>
    %c0_10 = arith.constant 0 : index
    %c0_11 = arith.constant 0 : index
    %15 = vector.load %arg5[%c0_10, %c0_11] : memref<128x128xf32, #tpu.memory_space<vmem>>, vector<128x128xf32>
    tpu.vector_store %arg5[%c0_10, %c0_11], %14 {strides = array<i32>} : memref<128x128xf32, #tpu.memory_space<vmem>>, vector<128x128xf32>,
    return
  }
  func.func @transform_0(%arg0: i32) -> (i32, i32) {
    %c0_i32 = arith.constant 0 : i32
    %c0_i32_0 = arith.constant 0 : i32
    return %arg0, %c0_i32 : i32, i32
  }
  func.func @transform_1(%arg0: i32) -> (i32, i32) {
    %c0_i32 = arith.constant 0 : i32
    %c0_i32_0 = arith.constant 0 : i32
    %c0_i32_1 = arith.constant 0 : i32
    return %c0_i32, %c0_i32_0 : i32, i32
  }
  func.func @transform_2(%arg0: i32) -> (i32, i32) {
    %c0_i32 = arith.constant 0 : i32
    %c0_i32_0 = arith.constant 0 : i32
    %c0_i32_1 = arith.constant 0 : i32
    return %c0_i32, %c0_i32_0 : i32, i32
  }
  func.func @transform_3(%arg0: i32) -> (i32, i32) {
    %c0_i32 = arith.constant 0 : i32
    %c0_i32_0 = arith.constant 0 : i32
    %c0_i32_1 = arith.constant 0 : i32
    return %c0_i32, %c0_i32_0 : i32, i32
  }
  func.func @transform_4(%arg0: i32) -> (i32, i32) {
    %c0_i32 = arith.constant 0 : i32
    %c0_i32_0 = arith.constant 0 : i32
    return %arg0, %c0_i32 : i32, i32
  }
}

</mosaic_0001>

<llo_original>
// kernel: tpu_custom_call.1
$region0: #{tpu_custom_call.1}
  #allocation0 [shape = 'u32[]', space=smem, size = 0x4, offset = 0x4, fixed_abs, tag = 'smem constant byte address 0x4 - core index']
  #allocation1 [shape = 'u32[144,128]{1,0:T(1,128)}', space=vmem, size = 0x12000, scoped, tag = 'internal scratch']
  %s0 = inlined_call_operand.vmem [shape: s32[512,1], index: 0, kind: input, shape index: {}]
  %s1 = inlined_call_operand.vmem [shape: f32[64,128], index: 1, kind: input, shape index: {}]
  %s2 = inlined_call_operand.vmem [shape: f32[64,8], index: 2, kind: input, shape index: {}]
  %s3 = inlined_call_operand.vmem [shape: f32[8,128], index: 3, kind: input, shape index: {}]
  %s4 = inlined_call_operand.hbm [shape: f32[512,128], index: 4, kind: output, shape index: {}]
  %s5 = sld [smem:[#allocation0]]
  $region49: #{tpu_custom_call.1} parent=0
    _
  %s7 = ssub.s32 1, %s5
  %s8 = scalar_select 0, %s7, %s5
  $region1: #{tpu_custom_call.1} parent=0
    #allocation2 [shape = 'u8[131072]{0}', space=vmem, size = 0x20000, scoped, tag = 'output window, operand 0']
    #allocation3 [shape = 's32[2]{0}', space=sflag, size = 0x8, scoped, tag = 'scoped memory for tpu_custom_call.1']
    %9 = vsyncpa [#allocation3], 0
    %s10 = scalar_lea.sflag [#allocation3], 1
    %11 = vsyncpa %s10, 0
    loop: start=0, step=1, limit=6
    $region2: #{tpu_custom_call.1} parent=1 // loop_pre_header
      _
    $region3: #{tpu_custom_call.1} parent=1 // loop_header
      %s13 = sphi 0, %s17
      %p14 = scmp.ge.s32.totalorder %s13, 6
      %s23 = sphi 0, %s25
      %s26 = sphi 0, %s23
      %s27 = sphi 0, %s26
      %s43 = sphi 0, %s27
      %s47 = sphi 0, %s47
      %s49 = sphi 0, %s47
      %s50 = sphi 0, %s49
      %s64 = sphi 0, %s50
      %s68 = sphi 0, %s68
      %s70 = sphi 0, %s68
      %s71 = sphi 0, %s70
      %s85 = sphi 0, %s71
      %s89 = sphi 0, %s89
      %s91 = sphi 0, %s89
      %s92 = sphi 0, %s91
      %s106 = sphi 0, %s92
      %s112 = sphi 0, %s114
      %s115 = sphi 0, %s112
      %s116 = sphi 0, %s115
      %s132 = sphi 0, %s116
    $region4: #{tpu_custom_call.1} parent=1 // loop_header_branch
      %16 = sbr.rel (%p14) target = $region8
    $region5: #{tpu_custom_call.1} parent=1 // loop_body
      %s18 = ssub.s32 %s13, 1
      %s19 = ssub.s32 %s13, 2
      %s20 = sadd.s32 %s13, 1
      %s21 = ssub.s32 %s13, %s20
      %p22 = scmp.eq.s32.totalorder %s21, 0
      %s24 = sadd.s32 %s23, 1
      %s25 = scalar_select %p22, %s23, %s24
      %p28 = pneg %p22
      %p29 = scmp.eq.s32.totalorder %s13, 3
      %p30 = por %p28, %p29
      %p31 = scmp.ne.s32.totalorder %s23, %s26
      %p32 = scmp.eq.s32.totalorder %s13, 0
      %p33 = por %p31, %p32
      %p34 = scmp.ne.s32.totalorder %s23, %s26
      %p35 = scmp.eq.s32.totalorder %s18, 3
      %p36 = por %p34, %p35
      %p37 = scmp.ne.s32.totalorder %s26, %s27
      %p38 = scmp.eq.s32.totalorder %s18, 0
      %p39 = por %p37, %p38
      %p40 = scmp.ne.s32.totalorder %s26, %s27
      %p41 = scmp.eq.s32.totalorder %s19, 3
      %p42 = por %p40, %p41
      %p44 = scmp.ne.s32.totalorder %s27, %s43
      %p45 = scmp.eq.s32.totalorder %s19, 0
      %p46 = por %p44, %p45
      %s48 = sadd.s32 %s47, 1
      %p51 = scmp.eq.s32.totalorder %s13, 3
      %p52 = scmp.ne.s32.totalorder %s47, %s49
      %p53 = scmp.eq.s32.totalorder %s13, 0
      %p54 = por %p52, %p53
      %p55 = scmp.ne.s32.totalorder %s47, %s49
      %p56 = scmp.eq.s32.totalorder %s18, 3
      %p57 = por %p55, %p56
      %p58 = scmp.ne.s32.totalorder %s49, %s50
      %p59 = scmp.eq.s32.totalorder %s18, 0
      %p60 = por %p58, %p59
      %p61 = scmp.ne.s32.totalorder %s49, %s50
      %p62 = scmp.eq.s32.totalorder %s19, 3
      %p63 = por %p61, %p62
      %p65 = scmp.ne.s32.totalorder %s50, %s64
      %p66 = scmp.eq.s32.totalorder %s19, 0
      %p67 = por %p65, %p66
      %s69 = sadd.s32 %s68, 1
      %p72 = scmp.eq.s32.totalorder %s13, 3
      %p73 = scmp.ne.s32.totalorder %s68, %s70
      %p74 = scmp.eq.s32.totalorder %s13, 0
      %p75 = por %p73, %p74
      %p76 = scmp.ne.s32.totalorder %s68, %s70
      %p77 = scmp.eq.s32.totalorder %s18, 3
      %p78 = por %p76, %p77
      %p79 = scmp.ne.s32.totalorder %s70, %s71
      %p80 = scmp.eq.s32.totalorder %s18, 0
      %p81 = por %p79, %p80
      %p82 = scmp.ne.s32.totalorder %s70, %s71
      %p83 = scmp.eq.s32.totalorder %s19, 3
      %p84 = por %p82, %p83
      %p86 = scmp.ne.s32.totalorder %s71, %s85
      %p87 = scmp.eq.s32.totalorder %s19, 0
      %p88 = por %p86, %p87
      %s90 = sadd.s32 %s89, 1
      %p93 = scmp.eq.s32.totalorder %s13, 3
      %p94 = scmp.ne.s32.totalorder %s89, %s91
      %p95 = scmp.eq.s32.totalorder %s13, 0
      %p96 = por %p94, %p95
      %p97 = scmp.ne.s32.totalorder %s89, %s91
      %p98 = scmp.eq.s32.totalorder %s18, 3
      %p99 = por %p97, %p98
      %p100 = scmp.ne.s32.totalorder %s91, %s92
      %p101 = scmp.eq.s32.totalorder %s18, 0
      %p102 = por %p100, %p101
      %p103 = scmp.ne.s32.totalorder %s91, %s92
      %p104 = scmp.eq.s32.totalorder %s19, 3
      %p105 = por %p103, %p104
      %p107 = scmp.ne.s32.totalorder %s92, %s106
      %p108 = scmp.eq.s32.totalorder %s19, 0
      %p109 = por %p107, %p108
      %s110 = ssub.s32 %s13, %s20
      %p111 = scmp.eq.s32.totalorder %s110, 0
      %s113 = sadd.s32 %s112, 1
      %s114 = scalar_select %p111, %s112, %s113
      %p117 = pneg %p111
      %p118 = scmp.eq.s32.totalorder %s13, 3
      %p119 = por %p117, %p118
      %p120 = scmp.ne.s32.totalorder %s112, %s115
      %p121 = scmp.eq.s32.totalorder %s13, 0
      %p122 = por %p120, %p121
      %p123 = scmp.ne.s32.totalorder %s112, %s115
      %p124 = scmp.eq.s32.totalorder %s18, 3
      %p125 = por %p123, %p124
      %p126 = scmp.ne.s32.totalorder %s115, %s116
      %p127 = scmp.eq.s32.totalorder %s18, 0
      %p128 = por %p126, %p127
      %p129 = scmp.ne.s32.totalorder %s115, %s116
      %p130 = scmp.eq.s32.totalorder %s19, 3
      %p131 = por %p129, %p130
      %p133 = scmp.ne.s32.totalorder %s116, %s132
      %p134 = scmp.eq.s32.totalorder %s19, 0
      %p135 = por %p133, %p134
      %p136 = scmp.le.s32.totalorder 1, %s13
      %p137 = scmp.lt.s32.totalorder %s13, 5
      %p138 = pnand %p136, %p137
      %p139 = pneg %p138
      // Predicated region
      $region9: #{tpu_custom_call.1} parent=5 // pred_check
        _
      $region10: #{tpu_custom_call.1} parent=5 // pred_check_branch
        %141 = sbr.rel (%p138) target = $region12
      $region11: #{tpu_custom_call.1} parent=5 // pred_region
        %s142 = ssub.s32 %s13, 1
        // Predicated region
        $region13: #{tpu_custom_call.1} parent=11 // pred_check
          %p143 = pneg %p60
        $region14: #{tpu_custom_call.1} parent=11 // pred_check_branch
          %145 = sbr.rel (%p143) target = $region16
        $region15: #{tpu_custom_call.1} parent=11 // pred_region
          _
        $region16: #{tpu_custom_call.1} parent=11 // pred_fallthru
          _
        // Predicated region
        $region17: #{tpu_custom_call.1} parent=11 // pred_check
          %p146 = pneg %p81
        $region18: #{tpu_custom_call.1} parent=11 // pred_check_branch
          %148 = sbr.rel (%p146) target = $region20
        $region19: #{tpu_custom_call.1} parent=11 // pred_region
          _
        $region20: #{tpu_custom_call.1} parent=11 // pred_fallthru
          _
        // Predicated region
        $region21: #{tpu_custom_call.1} parent=11 // pred_check
          %p149 = pneg %p102
        $region22: #{tpu_custom_call.1} parent=11 // pred_check_branch
          %151 = sbr.rel (%p149) target = $region24
        $region23: #{tpu_custom_call.1} parent=11 // pred_region
          _
        $region24: #{tpu_custom_call.1} parent=11 // pred_fallthru
          _
      $region12: #{tpu_custom_call.1} parent=5 // pred_fallthru
        _
      %p152 = scmp.lt.s32.totalorder %s13, 4
      // Predicated region
      $region25: #{tpu_custom_call.1} parent=5 // pred_check
        %p153 = pneg %p152
      $region26: #{tpu_custom_call.1} parent=5 // pred_check_branch
        %155 = sbr.rel (%p153) target = $region28
      $region27: #{tpu_custom_call.1} parent=5 // pred_region
        // Predicated region
        $region29: #{tpu_custom_call.1} parent=27 // pred_check
          %p156 = pneg %p33
        $region30: #{tpu_custom_call.1} parent=27 // pred_check_branch
          %158 = sbr.rel (%p156) target = $region32
        $region31: #{tpu_custom_call.1} parent=27 // pred_region
          %s159 = smul.u32 16, %s13
          %p160 = scmp.lt.s32.totalorder %s159, 63
          %s161 = scalar_select %p160, %s159, 63
          %s162 = smul.addr %s161, 8
          %s163 = scalar_lea.vmem %s0, %s162
          %s164 = smul.u32 16, %s13
        $region32: #{tpu_custom_call.1} parent=27 // pred_fallthru
          _
      $region28: #{tpu_custom_call.1} parent=5 // pred_fallthru
        _
      %p165 = scmp.le.s32.totalorder 1, %s13
      %p166 = scmp.lt.s32.totalorder %s13, 5
      %p167 = pnand %p165, %p166
      %p168 = pneg %p167
      // Predicated region
      $region33: #{tpu_custom_call.1} parent=5 // pred_check
        _
      $region34: #{tpu_custom_call.1} parent=5 // pred_check_branch
        %170 = sbr.rel (%p167) target = $region36
      $region35: #{tpu_custom_call.1} parent=5 // pred_region
        %s171 = ssub.s32 %s13, 1
        %s172 = smul.u32 16, %s18
        %p173 = scmp.lt.s32.totalorder %s172, 63
        %s174 = scalar_select %p173, %s172, 63
        %s175 = smul.addr %s174, 8
        %s176 = scalar_lea.vmem %s0, %s175
        %p177 = pneg %p39
        %p178 = pneg %p36
        %p179 = pneg %p60
        %p180 = pneg %p57
        %p181 = pneg %p81
        %p182 = pneg %p78
        %p183 = pneg %p102
        %p184 = pneg %p99
        %p185 = pneg %p128
        %p186 = pneg %p125
        %s187 = sand.u32 %s115, 1
        %s188 = scalar_lea.sflag [#allocation3], %s187
        %s189 = sand.u32 %s115, 1
        %s190 = smul.addr %s189, 128
        %s191 = scalar_lea.vmem [#allocation2], %s190
        %s192 = smul.u32 16, %s18
        %p193 = scmp.lt.s32.totalorder %s192, 63
        %s194 = scalar_select %p193, %s192, 63
        %s195 = smul.addr %s194, 8
        %s196 = scalar_lea.vmem %s0, %s195
        %s197 = smul.u32 16, %s18
        %s198 = smul.u32 16, %s18
        %v199 = vld [vmem:[%s196] sm:$0xff]
        %v200 = vld [vmem:[%s196 + $0x8] sm:$0xff]
        %v201 = vld [vmem:[%s196 + $0x10] sm:$0xff]
        %v202 = vld [vmem:[%s196 + $0x18] sm:$0xff]
        %v203 = vld [vmem:[%s196 + $0x20] sm:$0xff]
        %v204 = vld [vmem:[%s196 + $0x28] sm:$0xff]
        %v205 = vld [vmem:[%s196 + $0x30] sm:$0xff]
        %v206 = vld [vmem:[%s196 + $0x38] sm:$0xff]
        %v207 = vld [vmem:[%s196 + $0x40] sm:$0xff]
        %v208 = vld [vmem:[%s196 + $0x48] sm:$0xff]
        %v209 = vld [vmem:[%s196 + $0x50] sm:$0xff]
        %v210 = vld [vmem:[%s196 + $0x58] sm:$0xff]
        %v211 = vld [vmem:[%s196 + $0x60] sm:$0xff]
        %v212 = vld [vmem:[%s196 + $0x68] sm:$0xff]
        %v213 = vld [vmem:[%s196 + $0x70] sm:$0xff]
        %v214 = vld [vmem:[%s196 + $0x78] sm:$0xff]
        %v215 = vlaneseq
        %v216 = vand.u32 %v215, 127
        %217 = vset.pattern.permute.xlu0 0
        %218 = vperm.xlu0 %217, %v199
        %v219 = vpop.permute.xlu0 %218
        %220 = vset.pattern.permute.xlu0 0
        %221 = vperm.xlu0 %220, %v200
        %v222 = vpop.permute.xlu0 %221
        %223 = vset.pattern.permute.xlu0 0
        %224 = vperm.xlu0 %223, %v201
        %v225 = vpop.permute.xlu0 %224
        %226 = vset.pattern.permute.xlu0 0
        %227 = vperm.xlu0 %226, %v202
        %v228 = vpop.permute.xlu0 %227
        %229 = vset.pattern.permute.xlu0 0
        %230 = vperm.xlu0 %229, %v203
        %v231 = vpop.permute.xlu0 %230
        %232 = vset.pattern.permute.xlu0 0
        %233 = vperm.xlu0 %232, %v204
        %v234 = vpop.permute.xlu0 %233
        %235 = vset.pattern.permute.xlu0 0
        %236 = vperm.xlu0 %235, %v205
        %v237 = vpop.permute.xlu0 %236
        %238 = vset.pattern.permute.xlu0 0
        %239 = vperm.xlu0 %238, %v206
        %v240 = vpop.permute.xlu0 %239
        %241 = vset.pattern.permute.xlu0 0
        %242 = vperm.xlu0 %241, %v207
        %v243 = vpop.permute.xlu0 %242
        %244 = vset.pattern.permute.xlu0 0
        %245 = vperm.xlu0 %244, %v208
        %v246 = vpop.permute.xlu0 %245
        %247 = vset.pattern.permute.xlu0 0
        %248 = vperm.xlu0 %247, %v209
        %v249 = vpop.permute.xlu0 %248
        %250 = vset.pattern.permute.xlu0 0
        %251 = vperm.xlu0 %250, %v210
        %v252 = vpop.permute.xlu0 %251
        %253 = vset.pattern.permute.xlu0 0
        %254 = vperm.xlu0 %253, %v211
        %v255 = vpop.permute.xlu0 %254
        %256 = vset.pattern.permute.xlu0 0
        %257 = vperm.xlu0 %256, %v212
        %v258 = vpop.permute.xlu0 %257
        %259 = vset.pattern.permute.xlu0 0
        %260 = vperm.xlu0 %259, %v213
        %v261 = vpop.permute.xlu0 %260
        %262 = vset.pattern.permute.xlu0 0
        %263 = vperm.xlu0 %262, %v214
        %v264 = vpop.permute.xlu0 %263
        %vm265 = vcmp.eq.s32.totalorder %v216, %v219
        %vm266 = vcmp.eq.s32.totalorder %v216, %v222
        %vm267 = vcmp.eq.s32.totalorder %v216, %v225
        %vm268 = vcmp.eq.s32.totalorder %v216, %v228
        %vm269 = vcmp.eq.s32.totalorder %v216, %v231
        %vm270 = vcmp.eq.s32.totalorder %v216, %v234
        %vm271 = vcmp.eq.s32.totalorder %v216, %v237
        %vm272 = vcmp.eq.s32.totalorder %v216, %v240
        %vm273 = vcmp.eq.s32.totalorder %v216, %v243
        %vm274 = vcmp.eq.s32.totalorder %v216, %v246
        %vm275 = vcmp.eq.s32.totalorder %v216, %v249
        %vm276 = vcmp.eq.s32.totalorder %v216, %v252
        %vm277 = vcmp.eq.s32.totalorder %v216, %v255
        %vm278 = vcmp.eq.s32.totalorder %v216, %v258
        %vm279 = vcmp.eq.s32.totalorder %v216, %v261
        %vm280 = vcmp.eq.s32.totalorder %v216, %v264
        %v281 = vsel %vm265, 1, 0
        %v282 = vsel %vm266, 1, 0
        %v283 = vsel %vm267, 1, 0
        %v284 = vsel %vm268, 1, 0
        %v285 = vsel %vm269, 1, 0
        %v286 = vsel %vm270, 1, 0
        %v287 = vsel %vm271, 1, 0
        %v288 = vsel %vm272, 1, 0
        %v289 = vsel %vm273, 1, 0
        %v290 = vsel %vm274, 1, 0
        %v291 = vsel %vm275, 1, 0
        %v292 = vsel %vm276, 1, 0
        %v293 = vsel %vm277, 1, 0
        %v294 = vsel %vm278, 1, 0
        %v295 = vsel %vm279, 1, 0
        %v296 = vsel %vm280, 1, 0
        %v297 = vcvt.s32.f32 %v281
        %v298 = vcvt.s32.f32 %v282
        %v299 = vcvt.s32.f32 %v283
        %v300 = vcvt.s32.f32 %v284
        %v301 = vcvt.s32.f32 %v285
        %v302 = vcvt.s32.f32 %v286
        %v303 = vcvt.s32.f32 %v287
        %v304 = vcvt.s32.f32 %v288
        %v305 = vcvt.s32.f32 %v289
        %v306 = vcvt.s32.f32 %v290
        %v307 = vcvt.s32.f32 %v291
        %v308 = vcvt.s32.f32 %v292
        %v309 = vcvt.s32.f32 %v293
        %v310 = vcvt.s32.f32 %v294
        %v311 = vcvt.s32.f32 %v295
        %v312 = vcvt.s32.f32 %v296
        %v313 = vld [vmem:[%s1] sm:$0xff]
        %v314 = vld [vmem:[%s1 + $0x8] sm:$0xff]
        %v315 = vld [vmem:[%s1 + $0x10] sm:$0xff]
        %v316 = vld [vmem:[%s1 + $0x18] sm:$0xff]
        %v317 = vld [vmem:[%s1 + $0x20] sm:$0xff]
        %v318 = vld [vmem:[%s1 + $0x28] sm:$0xff]
        %v319 = vld [vmem:[%s1 + $0x30] sm:$0xff]
        %v320 = vld [vmem:[%s1 + $0x38] sm:$0xff]
        %v321 = vld [vmem:[%s2] sm:$0xff]
        %v322 = vld [vmem:[%s2 + $0x8] sm:$0xff]
        %v323 = vld [vmem:[%s2 + $0x10] sm:$0xff]
        %v324 = vld [vmem:[%s2 + $0x18] sm:$0xff]
        %v325 = vld [vmem:[%s2 + $0x20] sm:$0xff]
        %v326 = vld [vmem:[%s2 + $0x28] sm:$0xff]
        %v327 = vld [vmem:[%s2 + $0x30] sm:$0xff]
        %v328 = vld [vmem:[%s2 + $0x38] sm:$0xff]
        %vm329 = vcmask 523264
        %v331 = vsel %vm329, %v297, 0
        %v334 = vsel %vm329, %v298, 0
        %v337 = vsel %vm329, %v299, 0
        %v340 = vsel %vm329, %v300, 0
        %v343 = vsel %vm329, %v301, 0
        %v346 = vsel %vm329, %v302, 0
        %v349 = vsel %vm329, %v303, 0
        %v352 = vsel %vm329, %v304, 0
        %v355 = vsel %vm329, %v305, 0
        %v358 = vsel %vm329, %v306, 0
        %v361 = vsel %vm329, %v307, 0
        %v364 = vsel %vm329, %v308, 0
        %v367 = vsel %vm329, %v309, 0
        %v370 = vsel %vm329, %v310, 0
        %v373 = vsel %vm329, %v311, 0
        %v376 = vsel %vm329, %v312, 0
        %378 = vmatprep.subr.mxu0 0.0
        %379 = vmatpush1.msra.mxu0 0.0
        %380 = vmatprep.subr.mxu0 0.0
        %381 = vmatpush1.msra.mxu0 0.0
        %382 = vmatprep.subr.mxu0 0.0
        %383 = vmatpush1.msra.mxu0 0.0
        %384 = vmatprep.subr.mxu0 0.0
        %385 = vmatpush1.msra.mxu0 0.0
        %386 = vmatprep.subr.mxu0 0.0
        %387 = vmatpush1.msra.mxu0 0.0
        %388 = vmatprep.subr.mxu0 0.0
        %389 = vmatpush1.msra.mxu0 0.0
        %390 = vmatprep.subr.mxu0 0.0
        %391 = vmatpush1.msra.mxu0 0.0
        %392 = vmatprep.subr.mxu0 0.0
        %393 = vmatpush1.msra.mxu0 0.0
        %394 = vmatprep.subr.mxu0 0.0
        %395 = vmatpush1.msra.mxu0 %v328
        %396 = vmatprep.subr.mxu0 0.0
        %397 = vmatpush1.msra.mxu0 %v327
        %398 = vmatprep.subr.mxu0 0.0
        %399 = vmatpush1.msra.mxu0 %v326
        %400 = vmatprep.subr.mxu0 0.0
        %401 = vmatpush1.msra.mxu0 %v325
        %402 = vmatprep.subr.mxu0 0.0
        %403 = vmatpush1.msra.mxu0 %v324
        %404 = vmatprep.subr.mxu0 0.0
        %405 = vmatpush1.msra.mxu0 %v323
        %406 = vmatprep.subr.mxu0 0.0
        %407 = vmatpush1.msra.mxu0 %v322
        %408 = vmatprep.subr.mxu0 0.0
        %409 = vmatpush1.msra.mxu0 %v321
        %410 = vmatprep.subr.mxu0 0.0
        %411 = vmatpush2.msra.mxu0 0.0
        %412 = vmatprep.subr.mxu0 0.0
        %413 = vmatpush2.msra.mxu0 0.0
        %414 = vmatprep.subr.mxu0 0.0
        %415 = vmatpush2.msra.mxu0 0.0
        %416 = vmatprep.subr.mxu0 0.0
        %417 = vmatpush2.msra.mxu0 0.0
        %418 = vmatprep.subr.mxu0 0.0
        %419 = vmatpush2.msra.mxu0 0.0
        %420 = vmatprep.subr.mxu0 0.0
        %421 = vmatpush2.msra.mxu0 0.0
        %422 = vmatprep.subr.mxu0 0.0
        %423 = vmatpush2.msra.mxu0 0.0
        %424 = vmatprep.subr.mxu0 0.0
        %425 = vmatpush2.msra.mxu0 0.0
        %426 = vmatprep.subr.mxu0 0.0
        %427 = vmatpush2.msra.mxu0 0.0
        %428 = vmatprep.subr.mxu0 0.0
        %429 = vmatpush2.msra.mxu0 0.0
        %430 = vmatprep.subr.mxu0 0.0
        %431 = vmatpush2.msra.mxu0 0.0
        %432 = vmatprep.subr.mxu0 0.0
        %433 = vmatpush2.msra.mxu0 0.0
        %434 = vmatprep.subr.mxu0 0.0
        %435 = vmatpush2.msra.mxu0 0.0
        %436 = vmatprep.subr.mxu0 0.0
        %437 = vmatpush2.msra.mxu0 0.0
        %438 = vmatprep.subr.mxu0 0.0
        %439 = vmatpush2.msra.mxu0 0.0
        %440 = vmatprep.subr.mxu0 0.0
        %441 = vmatpush2.msra.mxu0 0.0
        %442 = vmatprep.mubr.f32.mxu0 0.0
        %443 = vmatmul.mubr.f32.gmra.mxu0 %v331
        %v444 = vpop.f32.mrf.mxu0
        %v445 = vadd.f32 0.0, %v444
        %v446 = vpop.f32.mrf.mxu0
        %447 = vmatprep.mubr.f32.mxu0 0.0
        %448 = vmatmul.mubr.f32.gmra.mxu0 %v334
        %v449 = vpop.f32.mrf.mxu0
        %v450 = vadd.f32 0.0, %v449
        %v451 = vpop.f32.mrf.mxu0
        %452 = vmatprep.mubr.f32.mxu0 0.0
        %453 = vmatmul.mubr.f32.gmra.mxu0 %v337
        %v454 = vpop.f32.mrf.mxu0
        %v455 = vadd.f32 0.0, %v454
        %v456 = vpop.f32.mrf.mxu0
        %457 = vmatprep.mubr.f32.mxu0 0.0
        %458 = vmatmul.mubr.f32.gmra.mxu0 %v340
        %v459 = vpop.f32.mrf.mxu0
        %v460 = vadd.f32 0.0, %v459
        %v461 = vpop.f32.mrf.mxu0
        %462 = vmatprep.mubr.f32.mxu0 0.0
        %463 = vmatmul.mubr.f32.gmra.mxu0 %v343
        %v464 = vpop.f32.mrf.mxu0
        %v465 = vadd.f32 0.0, %v464
        %v466 = vpop.f32.mrf.mxu0
        %467 = vmatprep.mubr.f32.mxu0 0.0
        %468 = vmatmul.mubr.f32.gmra.mxu0 %v346
        %v469 = vpop.f32.mrf.mxu0
        %v470 = vadd.f32 0.0, %v469
        %v471 = vpop.f32.mrf.mxu0
        %472 = vmatprep.mubr.f32.mxu0 0.0
        %473 = vmatmul.mubr.f32.gmra.mxu0 %v349
        %v474 = vpop.f32.mrf.mxu0
        %v475 = vadd.f32 0.0, %v474
        %v476 = vpop.f32.mrf.mxu0
        %477 = vmatprep.mubr.f32.mxu0 0.0
        %478 = vmatmul.mubr.f32.gmra.mxu0 %v352
        %v479 = vpop.f32.mrf.mxu0
        %v480 = vadd.f32 0.0, %v479
        %v481 = vpop.f32.mrf.mxu0
        %482 = vmatprep.mubr.f32.mxu0 0.0
        %483 = vmatmul.mubr.f32.gmra.mxu0 %v355
        %v484 = vpop.f32.mrf.mxu0
        %v485 = vadd.f32 0.0, %v484
        %v486 = vpop.f32.mrf.mxu0
        %487 = vmatprep.mubr.f32.mxu0 0.0
        %488 = vmatmul.mubr.f32.gmra.mxu0 %v358
        %v489 = vpop.f32.mrf.mxu0
        %v490 = vadd.f32 0.0, %v489
        %v491 = vpop.f32.mrf.mxu0
        %492 = vmatprep.mubr.f32.mxu0 0.0
        %493 = vmatmul.mubr.f32.gmra.mxu0 %v361
        %v494 = vpop.f32.mrf.mxu0
        %v495 = vadd.f32 0.0, %v494
        %v496 = vpop.f32.mrf.mxu0
        %497 = vmatprep.mubr.f32.mxu0 0.0
        %498 = vmatmul.mubr.f32.gmra.mxu0 %v364
        %v499 = vpop.f32.mrf.mxu0
        %v500 = vadd.f32 0.0, %v499
        %v501 = vpop.f32.mrf.mxu0
        %502 = vmatprep.mubr.f32.mxu0 0.0
        %503 = vmatmul.mubr.f32.gmra.mxu0 %v367
        %v504 = vpop.f32.mrf.mxu0
        %v505 = vadd.f32 0.0, %v504
        %v506 = vpop.f32.mrf.mxu0
        %507 = vmatprep.mubr.f32.mxu0 0.0
        %508 = vmatmul.mubr.f32.gmra.mxu0 %v370
        %v509 = vpop.f32.mrf.mxu0
        %v510 = vadd.f32 0.0, %v509
        %v511 = vpop.f32.mrf.mxu0
        %512 = vmatprep.mubr.f32.mxu0 0.0
        %513 = vmatmul.mubr.f32.gmra.mxu0 %v373
        %v514 = vpop.f32.mrf.mxu0
        %v515 = vadd.f32 0.0, %v514
        %v516 = vpop.f32.mrf.mxu0
        %517 = vmatprep.mubr.f32.mxu0 0.0
        %518 = vmatmul.mubr.f32.gmra.mxu0 %v376
        %v519 = vpop.f32.mrf.mxu0
        %v520 = vadd.f32 0.0, %v519
        %v521 = vpop.f32.mrf.mxu0
        %522 = vdwg.mxu0
        %v523 = vld [vmem:[%s3] sm:$0xff]
        %vm524 = vcmask 64512
        %v526 = vsel %vm524, %v445, 0
        %v529 = vsel %vm524, %v450, 0
        %v532 = vsel %vm524, %v455, 0
        %v535 = vsel %vm524, %v460, 0
        %v538 = vsel %vm524, %v465, 0
        %v541 = vsel %vm524, %v470, 0
        %v544 = vsel %vm524, %v475, 0
        %v547 = vsel %vm524, %v480, 0
        %v550 = vsel %vm524, %v485, 0
        %v553 = vsel %vm524, %v490, 0
        %v556 = vsel %vm524, %v495, 0
        %v559 = vsel %vm524, %v500, 0
        %v562 = vsel %vm524, %v505, 0
        %v565 = vsel %vm524, %v510, 0
        %v568 = vsel %vm524, %v515, 0
        %v571 = vsel %vm524, %v520, 0
        %573 = vmatprep.subr.mxu0 0.0
        %574 = vmatpush1.msra.mxu0 0.0
        %575 = vmatprep.subr.mxu0 0.0
        %576 = vmatpush1.msra.mxu0 0.0
        %577 = vmatprep.subr.mxu0 0.0
        %578 = vmatpush1.msra.mxu0 0.0
        %579 = vmatprep.subr.mxu0 0.0
        %580 = vmatpush1.msra.mxu0 0.0
        %581 = vmatprep.subr.mxu0 0.0
        %582 = vmatpush1.msra.mxu0 0.0
        %583 = vmatprep.subr.mxu0 0.0
        %584 = vmatpush1.msra.mxu0 0.0
        %585 = vmatprep.subr.mxu0 0.0
        %586 = vmatpush1.msra.mxu0 0.0
        %587 = vmatprep.subr.mxu0 0.0
        %588 = vmatpush1.msra.mxu0 0.0
        %589 = vmatprep.subr.mxu0 0.0
        %590 = vmatpush1.msra.mxu0 0.0
        %591 = vmatprep.subr.mxu0 0.0
        %592 = vmatpush1.msra.mxu0 0.0
        %593 = vmatprep.subr.mxu0 0.0
        %594 = vmatpush1.msra.mxu0 0.0
        %595 = vmatprep.subr.mxu0 0.0
        %596 = vmatpush1.msra.mxu0 0.0
        %597 = vmatprep.subr.mxu0 0.0
        %598 = vmatpush1.msra.mxu0 0.0
        %599 = vmatprep.subr.mxu0 0.0
        %600 = vmatpush1.msra.mxu0 0.0
        %601 = vmatprep.subr.mxu0 0.0
        %602 = vmatpush1.msra.mxu0 0.0
        %603 = vmatprep.subr.mxu0 0.0
        %604 = vmatpush1.msra.mxu0 %v523
        %605 = vmatprep.subr.mxu0 0.0
        %606 = vmatpush2.msra.mxu0 0.0
        %607 = vmatprep.subr.mxu0 0.0
        %608 = vmatpush2.msra.mxu0 0.0
        %609 = vmatprep.subr.mxu0 0.0
        %610 = vmatpush2.msra.mxu0 0.0
        %611 = vmatprep.subr.mxu0 0.0
        %612 = vmatpush2.msra.mxu0 0.0
        %613 = vmatprep.subr.mxu0 0.0
        %614 = vmatpush2.msra.mxu0 0.0
        %615 = vmatprep.subr.mxu0 0.0
        %616 = vmatpush2.msra.mxu0 0.0
        %617 = vmatprep.subr.mxu0 0.0
        %618 = vmatpush2.msra.mxu0 0.0
        %619 = vmatprep.subr.mxu0 0.0
        %620 = vmatpush2.msra.mxu0 0.0
        %621 = vmatprep.subr.mxu0 0.0
        %622 = vmatpush2.msra.mxu0 0.0
        %623 = vmatprep.subr.mxu0 0.0
        %624 = vmatpush2.msra.mxu0 0.0
        %625 = vmatprep.subr.mxu0 0.0
        %626 = vmatpush2.msra.mxu0 0.0
        %627 = vmatprep.subr.mxu0 0.0
        %628 = vmatpush2.msra.mxu0 0.0
        %629 = vmatprep.subr.mxu0 0.0
        %630 = vmatpush2.msra.mxu0 0.0
        %631 = vmatprep.subr.mxu0 0.0
        %632 = vmatpush2.msra.mxu0 0.0
        %633 = vmatprep.subr.mxu0 0.0
        %634 = vmatpush2.msra.mxu0 0.0
        %635 = vmatprep.subr.mxu0 0.0
        %636 = vmatpush2.msra.mxu0 0.0
        %637 = vmatprep.mubr.f32.mxu0 0.0
        %638 = vmatmul.mubr.f32.gmra.mxu0 %v526
        %v639 = vpop.f32.mrf.mxu0
        %v640 = vadd.f32 0.0, %v639
        %v641 = vpop.f32.mrf.mxu0
        %642 = vmatprep.mubr.f32.mxu0 0.0
        %643 = vmatmul.mubr.f32.gmra.mxu0 %v529
        %v644 = vpop.f32.mrf.mxu0
        %v645 = vadd.f32 0.0, %v644
        %v646 = vpop.f32.mrf.mxu0
        %647 = vmatprep.mubr.f32.mxu0 0.0
        %648 = vmatmul.mubr.f32.gmra.mxu0 %v532
        %v649 = vpop.f32.mrf.mxu0
        %v650 = vadd.f32 0.0, %v649
        %v651 = vpop.f32.mrf.mxu0
        %652 = vmatprep.mubr.f32.mxu0 0.0
        %653 = vmatmul.mubr.f32.gmra.mxu0 %v535
        %v654 = vpop.f32.mrf.mxu0
        %v655 = vadd.f32 0.0, %v654
        %v656 = vpop.f32.mrf.mxu0
        %657 = vmatprep.mubr.f32.mxu0 0.0
        %658 = vmatmul.mubr.f32.gmra.mxu0 %v538
        %v659 = vpop.f32.mrf.mxu0
        %v660 = vadd.f32 0.0, %v659
        %v661 = vpop.f32.mrf.mxu0
        %662 = vmatprep.mubr.f32.mxu0 0.0
        %663 = vmatmul.mubr.f32.gmra.mxu0 %v541
        %v664 = vpop.f32.mrf.mxu0
        %v665 = vadd.f32 0.0, %v664
        %v666 = vpop.f32.mrf.mxu0
        %667 = vmatprep.mubr.f32.mxu0 0.0
        %668 = vmatmul.mubr.f32.gmra.mxu0 %v544
        %v669 = vpop.f32.mrf.mxu0
        %v670 = vadd.f32 0.0, %v669
        %v671 = vpop.f32.mrf.mxu0
        %672 = vmatprep.mubr.f32.mxu0 0.0
        %673 = vmatmul.mubr.f32.gmra.mxu0 %v547
        %v674 = vpop.f32.mrf.mxu0
        %v675 = vadd.f32 0.0, %v674
        %v676 = vpop.f32.mrf.mxu0
        %677 = vmatprep.mubr.f32.mxu0 0.0
        %678 = vmatmul.mubr.f32.gmra.mxu0 %v550
        %v679 = vpop.f32.mrf.mxu0
        %v680 = vadd.f32 0.0, %v679
        %v681 = vpop.f32.mrf.mxu0
        %682 = vmatprep.mubr.f32.mxu0 0.0
        %683 = vmatmul.mubr.f32.gmra.mxu0 %v553
        %v684 = vpop.f32.mrf.mxu0
        %v685 = vadd.f32 0.0, %v684
        %v686 = vpop.f32.mrf.mxu0
        %687 = vmatprep.mubr.f32.mxu0 0.0
        %688 = vmatmul.mubr.f32.gmra.mxu0 %v556
        %v689 = vpop.f32.mrf.mxu0
        %v690 = vadd.f32 0.0, %v689
        %v691 = vpop.f32.mrf.mxu0
        %692 = vmatprep.mubr.f32.mxu0 0.0
        %693 = vmatmul.mubr.f32.gmra.mxu0 %v559
        %v694 = vpop.f32.mrf.mxu0
        %v695 = vadd.f32 0.0, %v694
        %v696 = vpop.f32.mrf.mxu0
        %697 = vmatprep.mubr.f32.mxu0 0.0
        %698 = vmatmul.mubr.f32.gmra.mxu0 %v562
        %v699 = vpop.f32.mrf.mxu0
        %v700 = vadd.f32 0.0, %v699
        %v701 = vpop.f32.mrf.mxu0
        %702 = vmatprep.mubr.f32.mxu0 0.0
        %703 = vmatmul.mubr.f32.gmra.mxu0 %v565
        %v704 = vpop.f32.mrf.mxu0
        %v705 = vadd.f32 0.0, %v704
        %v706 = vpop.f32.mrf.mxu0
        %707 = vmatprep.mubr.f32.mxu0 0.0
        %708 = vmatmul.mubr.f32.gmra.mxu0 %v568
        %v709 = vpop.f32.mrf.mxu0
        %v710 = vadd.f32 0.0, %v709
        %v711 = vpop.f32.mrf.mxu0
        %712 = vmatprep.mubr.f32.mxu0 0.0
        %713 = vmatmul.mubr.f32.gmra.mxu0 %v571
        %v714 = vpop.f32.mrf.mxu0
        %v715 = vadd.f32 0.0, %v714
        %v716 = vpop.f32.mrf.mxu0
        %717 = vdwg.mxu0
        %v718 = vmul.f32 %v640, 2.0
        %v719 = vmul.f32 %v645, 2.0
        %v720 = vmul.f32 %v650, 2.0
        %v721 = vmul.f32 %v655, 2.0
        %v722 = vmul.f32 %v660, 2.0
        %v723 = vmul.f32 %v665, 2.0
        %v724 = vmul.f32 %v670, 2.0
        %v725 = vmul.f32 %v675, 2.0
        %v726 = vmul.f32 %v680, 2.0
        %v727 = vmul.f32 %v685, 2.0
        %v728 = vmul.f32 %v690, 2.0
        %v729 = vmul.f32 %v695, 2.0
        %v730 = vmul.f32 %v700, 2.0
        %v731 = vmul.f32 %v705, 2.0
        %v732 = vmul.f32 %v710, 2.0
        %v733 = vmul.f32 %v715, 2.0
        %734 = vmatprep.subr.mxu0 0.0
        %735 = vmatpush1.msra.mxu0 0.0
        %736 = vmatprep.subr.mxu0 0.0
        %737 = vmatpush1.msra.mxu0 0.0
        %738 = vmatprep.subr.mxu0 0.0
        %739 = vmatpush1.msra.mxu0 0.0
        %740 = vmatprep.subr.mxu0 0.0
        %741 = vmatpush1.msra.mxu0 0.0
        %742 = vmatprep.subr.mxu0 0.0
        %743 = vmatpush1.msra.mxu0 0.0
        %744 = vmatprep.subr.mxu0 0.0
        %745 = vmatpush1.msra.mxu0 0.0
        %746 = vmatprep.subr.mxu0 0.0
        %747 = vmatpush1.msra.mxu0 0.0
        %748 = vmatprep.subr.mxu0 0.0
        %749 = vmatpush1.msra.mxu0 0.0
        %750 = vmatprep.subr.mxu0 0.0
        %751 = vmatpush1.msra.mxu0 %v320
        %752 = vmatprep.subr.mxu0 0.0
        %753 = vmatpush1.msra.mxu0 %v319
        %754 = vmatprep.subr.mxu0 0.0
        %755 = vmatpush1.msra.mxu0 %v318
        %756 = vmatprep.subr.mxu0 0.0
        %757 = vmatpush1.msra.mxu0 %v317
        %758 = vmatprep.subr.mxu0 0.0
        %759 = vmatpush1.msra.mxu0 %v316
        %760 = vmatprep.subr.mxu0 0.0
        %761 = vmatpush1.msra.mxu0 %v315
        %762 = vmatprep.subr.mxu0 0.0
        %763 = vmatpush1.msra.mxu0 %v314
        %764 = vmatprep.subr.mxu0 0.0
        %765 = vmatpush1.msra.mxu0 %v313
        %766 = vmatprep.subr.mxu0 0.0
        %767 = vmatpush2.msra.mxu0 0.0
        %768 = vmatprep.subr.mxu0 0.0
        %769 = vmatpush2.msra.mxu0 0.0
        %770 = vmatprep.subr.mxu0 0.0
        %771 = vmatpush2.msra.mxu0 0.0
        %772 = vmatprep.subr.mxu0 0.0
        %773 = vmatpush2.msra.mxu0 0.0
        %774 = vmatprep.subr.mxu0 0.0
        %775 = vmatpush2.msra.mxu0 0.0
        %776 = vmatprep.subr.mxu0 0.0
        %777 = vmatpush2.msra.mxu0 0.0
        %778 = vmatprep.subr.mxu0 0.0
        %779 = vmatpush2.msra.mxu0 0.0
        %780 = vmatprep.subr.mxu0 0.0
        %781 = vmatpush2.msra.mxu0 0.0
        %782 = vmatprep.subr.mxu0 0.0
        %783 = vmatpush2.msra.mxu0 0.0
        %784 = vmatprep.subr.mxu0 0.0
        %785 = vmatpush2.msra.mxu0 0.0
        %786 = vmatprep.subr.mxu0 0.0
        %787 = vmatpush2.msra.mxu0 0.0
        %788 = vmatprep.subr.mxu0 0.0
        %789 = vmatpush2.msra.mxu0 0.0
        %790 = vmatprep.subr.mxu0 0.0
        %791 = vmatpush2.msra.mxu0 0.0
        %792 = vmatprep.subr.mxu0 0.0
        %793 = vmatpush2.msra.mxu0 0.0
        %794 = vmatprep.subr.mxu0 0.0
        %795 = vmatpush2.msra.mxu0 0.0
        %796 = vmatprep.subr.mxu0 0.0
        %797 = vmatpush2.msra.mxu0 0.0
        %798 = vmatprep.mubr.f32.mxu0 0.0
        %799 = vmatmul.mubr.f32.gmra.mxu0 %v331
        %v800 = vpop.f32.mrf.mxu0
        %v801 = vadd.f32 %v718, %v800
        %v802 = vpop.f32.mrf.mxu0
        %803 = vmatprep.mubr.f32.mxu0 0.0
        %804 = vmatmul.mubr.f32.gmra.mxu0 %v334
        %v805 = vpop.f32.mrf.mxu0
        %v806 = vadd.f32 %v719, %v805
        %v807 = vpop.f32.mrf.mxu0
        %808 = vmatprep.mubr.f32.mxu0 0.0
        %809 = vmatmul.mubr.f32.gmra.mxu0 %v337
        %v810 = vpop.f32.mrf.mxu0
        %v811 = vadd.f32 %v720, %v810
        %v812 = vpop.f32.mrf.mxu0
        %813 = vmatprep.mubr.f32.mxu0 0.0
        %814 = vmatmul.mubr.f32.gmra.mxu0 %v340
        %v815 = vpop.f32.mrf.mxu0
        %v816 = vadd.f32 %v721, %v815
        %v817 = vpop.f32.mrf.mxu0
        %818 = vmatprep.mubr.f32.mxu0 0.0
        %819 = vmatmul.mubr.f32.gmra.mxu0 %v343
        %v820 = vpop.f32.mrf.mxu0
        %v821 = vadd.f32 %v722, %v820
        %v822 = vpop.f32.mrf.mxu0
        %823 = vmatprep.mubr.f32.mxu0 0.0
        %824 = vmatmul.mubr.f32.gmra.mxu0 %v346
        %v825 = vpop.f32.mrf.mxu0
        %v826 = vadd.f32 %v723, %v825
        %v827 = vpop.f32.mrf.mxu0
        %828 = vmatprep.mubr.f32.mxu0 0.0
        %829 = vmatmul.mubr.f32.gmra.mxu0 %v349
        %v830 = vpop.f32.mrf.mxu0
        %v831 = vadd.f32 %v724, %v830
        %v832 = vpop.f32.mrf.mxu0
        %833 = vmatprep.mubr.f32.mxu0 0.0
        %834 = vmatmul.mubr.f32.gmra.mxu0 %v352
        %v835 = vpop.f32.mrf.mxu0
        %v836 = vadd.f32 %v725, %v835
        %v837 = vpop.f32.mrf.mxu0
        %838 = vmatprep.mubr.f32.mxu0 0.0
        %839 = vmatmul.mubr.f32.gmra.mxu0 %v355
        %v840 = vpop.f32.mrf.mxu0
        %v841 = vadd.f32 %v726, %v840
        %v842 = vpop.f32.mrf.mxu0
        %843 = vmatprep.mubr.f32.mxu0 0.0
        %844 = vmatmul.mubr.f32.gmra.mxu0 %v358
        %v845 = vpop.f32.mrf.mxu0
        %v846 = vadd.f32 %v727, %v845
        %v847 = vpop.f32.mrf.mxu0
        %848 = vmatprep.mubr.f32.mxu0 0.0
        %849 = vmatmul.mubr.f32.gmra.mxu0 %v361
        %v850 = vpop.f32.mrf.mxu0
        %v851 = vadd.f32 %v728, %v850
        %v852 = vpop.f32.mrf.mxu0
        %853 = vmatprep.mubr.f32.mxu0 0.0
        %854 = vmatmul.mubr.f32.gmra.mxu0 %v364
        %v855 = vpop.f32.mrf.mxu0
        %v856 = vadd.f32 %v729, %v855
        %v857 = vpop.f32.mrf.mxu0
        %858 = vmatprep.mubr.f32.mxu0 0.0
        %859 = vmatmul.mubr.f32.gmra.mxu0 %v367
        %v860 = vpop.f32.mrf.mxu0
        %v861 = vadd.f32 %v730, %v860
        %v862 = vpop.f32.mrf.mxu0
        %863 = vmatprep.mubr.f32.mxu0 0.0
        %864 = vmatmul.mubr.f32.gmra.mxu0 %v370
        %v865 = vpop.f32.mrf.mxu0
        %v866 = vadd.f32 %v731, %v865
        %v867 = vpop.f32.mrf.mxu0
        %868 = vmatprep.mubr.f32.mxu0 0.0
        %869 = vmatmul.mubr.f32.gmra.mxu0 %v373
        %v870 = vpop.f32.mrf.mxu0
        %v871 = vadd.f32 %v732, %v870
        %v872 = vpop.f32.mrf.mxu0
        %873 = vmatprep.mubr.f32.mxu0 0.0
        %874 = vmatmul.mubr.f32.gmra.mxu0 %v376
        %v875 = vpop.f32.mrf.mxu0
        %v876 = vadd.f32 %v733, %v875
        %v877 = vpop.f32.mrf.mxu0
        %878 = vdwg.mxu0
        %879 = vst [vmem:[%s191] sm:$0xff] %v801
        %880 = vst [vmem:[%s191 + $0x8] sm:$0xff] %v806
        %881 = vst [vmem:[%s191 + $0x10] sm:$0xff] %v811
        %882 = vst [vmem:[%s191 + $0x18] sm:$0xff] %v816
        %883 = vst [vmem:[%s191 + $0x20] sm:$0xff] %v821
        %884 = vst [vmem:[%s191 + $0x28] sm:$0xff] %v826
        %885 = vst [vmem:[%s191 + $0x30] sm:$0xff] %v831
        %886 = vst [vmem:[%s191 + $0x38] sm:$0xff] %v836
        %887 = vst [vmem:[%s191 + $0x40] sm:$0xff] %v841
        %888 = vst [vmem:[%s191 + $0x48] sm:$0xff] %v846
        %889 = vst [vmem:[%s191 + $0x50] sm:$0xff] %v851
        %890 = vst [vmem:[%s191 + $0x58] sm:$0xff] %v856
        %891 = vst [vmem:[%s191 + $0x60] sm:$0xff] %v861
        %892 = vst [vmem:[%s191 + $0x68] sm:$0xff] %v866
        %893 = vst [vmem:[%s191 + $0x70] sm:$0xff] %v871
        %894 = vst [vmem:[%s191 + $0x78] sm:$0xff] %v876
        %s895 = sand.u32 %s115, 1
        %s896 = scalar_lea.sflag [#allocation3], %s895
        %s897 = sand.u32 %s115, 1
        %s898 = smul.addr %s897, 128
        %s899 = scalar_lea.vmem [#allocation2], %s898
        // Predicated region
        $region37: #{tpu_custom_call.1} parent=35 // pred_check
          %p900 = pneg %p125
        $region38: #{tpu_custom_call.1} parent=35 // pred_check_branch
          %902 = sbr.rel (%p900) target = $region40
        $region39: #{tpu_custom_call.1} parent=35 // pred_region
          %s903 = smul.u32 16, %s18
          %s905 = ssub.s32 2048, 2048
          %906 = vsyncadd %s896, %s905
          %s907 = smul.addr %s903, 128
          %s908 = scalar_lea.hbm %s4, %s907
          %s909 = sshll.u32 %s899, 4
          %s910 = int_to_ptr.vmem [resolvable:$true] %s909
          %915 = dma.vmem_to_hbm [thread:$0]  %s910, 2048, %s908, %s896, 128, 128, 8
        $region40: #{tpu_custom_call.1} parent=35 // pred_fallthru
          _
      $region36: #{tpu_custom_call.1} parent=5 // pred_fallthru
        _
      %p916 = scmp.le.s32.totalorder 2, %s13
      // Predicated region
      $region41: #{tpu_custom_call.1} parent=5 // pred_check
        %p917 = pneg %p916
      $region42: #{tpu_custom_call.1} parent=5 // pred_check_branch
        %919 = sbr.rel (%p917) target = $region44
      $region43: #{tpu_custom_call.1} parent=5 // pred_region
        %s920 = ssub.s32 %s13, 2
        // Predicated region
        $region45: #{tpu_custom_call.1} parent=43 // pred_check
          %p921 = pneg %p131
        $region46: #{tpu_custom_call.1} parent=43 // pred_check_branch
          %923 = sbr.rel (%p921) target = $region48
        $region47: #{tpu_custom_call.1} parent=43 // pred_region
          %s924 = sand.u32 %s116, 1
          %s925 = scalar_lea.sflag [#allocation3], %s924
          %s926 = sand.u32 %s116, 1
          %s927 = smul.addr %s926, 128
          %s928 = scalar_lea.vmem [#allocation2], %s927
          %929 = dma.done %s925, 2048
        $region48: #{tpu_custom_call.1} parent=43 // pred_fallthru
          _
      $region44: #{tpu_custom_call.1} parent=5 // pred_fallthru
        _
    $region6: #{tpu_custom_call.1} parent=1 // loop_footer
      %s17 = sadd.s32 1, %s13
    $region7: #{tpu_custom_call.1} parent=1 // loop_footer_branch
      %12 = sbr.rel target = $region3
    $region8: #{tpu_custom_call.1} parent=1 // loop_exit
      _
    %930 = vsyncpa [#allocation3], 1
    %s931 = scalar_lea.sflag [#allocation3], 1
    %932 = vsyncpa %s931, 1

</llo_original>
